<compile_context>
chip_gen: v6e
topology: v6e:2x2x1
jax: 0.10.0
libtpu: 0.0.40
codegen_flags: <defaults>
</compile_context>

<pallas_src>
import jax
import jax.numpy as jnp
from jax.experimental import pallas as pl
from jax.experimental.pallas import tpu as pltpu

LANE = 128
SUBLANE = 8
VMEM_LIMIT = 48 * 1024 * 1024  # <= v7x's 64 MiB/TC; v5e/v6e have 128 MiB physical


def _round_up(n, m):
    return ((n + m - 1) // m) * m


def _choose_tb(B, row_bytes, tile_budget_bytes):
    """Pick the batch-tile size TB (multiple of 8 sublanes).

    Big tiles amortize the ~0.35 us per-grid-step overhead, but must fit the
    VMEM budget; also avoid a mostly-padding tail tile, and prefer >= 2 grid
    steps for large batches so both v7x TensorCores get work.
    """
    max_tb = max(SUBLANE, (tile_budget_bytes // max(row_bytes, 1)) // SUBLANE * SUBLANE)
    max_tb = min(max_tb, 1024)  # diminishing returns past ~512-1024 rows
    if B <= max_tb:
        tb = _round_up(B, SUBLANE)
        # Split into two equal "parallel" steps (v7x megacore) when it costs
        # no extra padding and tiles stay >= one lane-width tall.
        if tb >= 2 * LANE and (tb // 2) % SUBLANE == 0:
            tb //= 2
        return tb
    # Large batch: choose the lane-multiple tile minimizing padded rows plus a
    # per-step overhead modeled as ~64 rows of work.
    best_tb, best_cost = LANE, None
    for tb in range(LANE, max_tb + 1, LANE):
        rows = _round_up(B, tb)
        cost = rows + (rows // tb) * 64
        if best_cost is None or cost < best_cost:
            best_tb, best_cost = tb, cost
    return best_tb


def two_layer_kernel(x_ref, w1_ref, b1_ref, w2_ref, b2_ref, o_ref):
    # fc1: bf16 x @ bf16 W1 on the MXU, f32 accumulation, f32 bias add.
    h = jnp.dot(x_ref[...], w1_ref[...], preferred_element_type=jnp.float32)
    h = h + b1_ref[...]                              # (TB, Hp) + (1, Hp)
    # Exact sigmoid via a single EUP op per element: sigmoid(h) = 0.5*tanh(0.5*h)+0.5.
    # (Kept in f32 so the same kernel runs on v5e's f32-only VPU/EUP.)
    h = 0.5 * jnp.tanh(0.5 * h) + 0.5
    # fc2: cast activation to bf16 only around the dot, accumulate in f32.
    y = jnp.dot(h.astype(w2_ref.dtype), w2_ref[...],
                preferred_element_type=jnp.float32)
    o_ref[...] = (y + b2_ref[...]).astype(o_ref.dtype)  # (TB, Dop) + (1, Dop)


def prepare_params(w1, b1, w2, b2):
    """One-time weight prep (hoisted out of the per-forward path):
    zero-pad every feature dim to a full 128-lane width and cast the matmul
    operands to bf16.  Zero padding is numerically exact here: padded x cols
    are 0, padded W1 cols are 0 (padded h lanes = sigmoid(0) = 0.5), and
    padded W2 rows/cols are 0, so padded lanes never touch real outputs."""
    D_in, H = w1.shape
    D_out = w2.shape[1]
    D_in_p, H_p, D_out_p = (_round_up(d, LANE) for d in (D_in, H, D_out))
    f32, bf16 = jnp.float32, jnp.bfloat16
    w1_p = jnp.zeros((D_in_p, H_p), f32).at[:D_in, :H].set(w1).astype(bf16)
    b1_p = jnp.zeros((1, H_p), f32).at[:, :H].set(jnp.reshape(b1, (1, H)))
    w2_p = jnp.zeros((H_p, D_out_p), f32).at[:H, :D_out].set(w2).astype(bf16)
    b2_p = jnp.zeros((1, D_out_p), f32).at[:, :D_out].set(jnp.reshape(b2, (1, D_out)))
    return {"w1": w1_p, "b1": b1_p, "w2": w2_p, "b2": b2_p,
            "dims": (D_in, H, D_out)}


def two_layer_net(x, params):
    """x: (B, D_in) f32; params: output of prepare_params (padded, bf16 weights)."""
    w1_p, b1_p, w2_p, b2_p = params["w1"], params["b1"], params["w2"], params["b2"]
    D_in, H, D_out = params["dims"]
    B = x.shape[0]
    assert x.shape[1] == D_in
    D_in_p, H_p = w1_p.shape
    D_out_p = w2_p.shape[1]
    f32, bf16 = jnp.float32, jnp.bfloat16

    # VMEM budget (bytes): single-buffered resident weights + per-row cost of a
    # batch tile (double-buffered bf16 x tile + double-buffered f32 out tile +
    # f32 intermediate h + its bf16 copy + f32 y).
    weight_bytes = (w1_p.size + w2_p.size) * 2 + (b1_p.size + b2_p.size) * 4
    row_bytes = 2 * D_in_p * 2 + 2 * D_out_p * 4 + H_p * (4 + 2) + D_out_p * 4
    if weight_bytes + SUBLANE * row_bytes + (8 << 20) > VMEM_LIMIT:
        # TODO(synk): add a K-tiled contraction fallback (extra "arbitrary" grid
        # axis + f32 VMEM accumulator with pl.when init/finalize) for weights
        # too large to keep fully resident in v7x's 64 MiB VMEM.
        raise NotImplementedError("weights too large to keep fully VMEM-resident")

    TB = _choose_tb(B, row_bytes, VMEM_LIMIT - weight_bytes - (8 << 20))
    B_p = _round_up(B, TB)

    # Pad/cast the activations only when shapes don't already conform.
    if B_p == B and D_in_p == D_in:
        x_p = x.astype(bf16)
    else:
        x_p = jnp.zeros((B_p, D_in_p), f32).at[:B, :D_in].set(x).astype(bf16)

    grid = (B_p // TB,)
    cost = pl.CostEstimate(
        flops=2 * B_p * (D_in_p * H_p + H_p * D_out_p),
        transcendentals=B_p * H_p,  # one tanh per hidden element
        bytes_accessed=(x_p.size * 2 + w1_p.size * 2 + w2_p.size * 2
                        + b1_p.size * 4 + b2_p.size * 4 + B_p * D_out_p * 4),
    )

    def call(resident_mode):
        # Grid-invariant weight/bias blocks: constant index_map; single-buffer
        # them when supported so they don't occupy 2x VMEM.
        resident = {} if resident_mode is None else {"pipeline_mode": resident_mode}
        return pl.pallas_call(
            two_layer_kernel,
            out_shape=jax.ShapeDtypeStruct((B_p, D_out_p), f32),
            grid_spec=pltpu.PrefetchScalarGridSpec(
                num_scalar_prefetch=0,
                grid=grid,
                in_specs=[
                    pl.BlockSpec((TB, D_in_p), lambda i: (i, 0)),              # batch-tiled
                    pl.BlockSpec((D_in_p, H_p), lambda i: (0, 0), **resident),  # resident
                    pl.BlockSpec((1, H_p), lambda i: (0, 0), **resident),       # resident
                    pl.BlockSpec((H_p, D_out_p), lambda i: (0, 0), **resident), # resident
                    pl.BlockSpec((1, D_out_p), lambda i: (0, 0), **resident),   # resident
                ],
                out_specs=pl.BlockSpec((TB, D_out_p), lambda i: (i, 0)),
            ),
            compiler_params=pltpu.CompilerParams(
                dimension_semantics=("parallel",),  # megacore-shardable on v7x
                vmem_limit_bytes=VMEM_LIMIT,
            ),
            cost_estimate=cost,
        )(x_p, w1_p, b1_p, w2_p, b2_p)

    try:
        out_p = call(pl.Buffered(1))
    except Exception:
        out_p = call(None)  # fall back to default double-buffering

    if B_p == B and D_out_p == D_out:
        return out_p          # no extra slice/copy when shapes already conform
    return out_p[:B, :D_out]


def init_params(key, d_in, h, d_out, dtype=jnp.float32):
    """Deterministic PyTorch-style Linear init: U(-1/sqrt(fan_in), 1/sqrt(fan_in)).
    Weights are stored already transposed to [in, out]."""
    k1, k2, k3, k4 = jax.random.split(key, 4)
    bound1 = 1.0 / (d_in ** 0.5)
    bound2 = 1.0 / (h ** 0.5)
    w1 = jax.random.uniform(k1, (d_in, h), dtype, -bound1, bound1)
    b1 = jax.random.uniform(k2, (1, h), dtype, -bound1, bound1)
    w2 = jax.random.uniform(k3, (h, d_out), dtype, -bound2, bound2)
    b2 = jax.random.uniform(k4, (1, d_out), dtype, -bound2, bound2)
    return w1, b1, w2, b2


if __name__ == "__main__":
    # Small shapes consistent with a Linear -> sigmoid -> Linear MLP.
    B, D_in, H, D_out = 8, 32, 64, 36
    key = jax.random.PRNGKey(0)
    kx, kp = jax.random.split(key)
    x = jax.random.normal(kx, (B, D_in), jnp.float32)
    w1, b1, w2, b2 = init_params(kp, D_in, H, D_out)

    params = prepare_params(w1, b1, w2, b2)   # one-time pad + bf16 cast
    out = two_layer_net(x, params)
    jax.block_until_ready(out)
    assert out.shape == (B, D_out)

    # Reference matching the kernel's bf16 matmul operands (f32 accumulation);
    # the activation itself is exact sigmoid (tanh form), so residual error is
    # only the bf16 rounding of the operands.
    f32 = jnp.float32
    xb = x.astype(jnp.bfloat16).astype(f32)
    w1b = w1.astype(jnp.bfloat16).astype(f32)
    w2b = w2.astype(jnp.bfloat16).astype(f32)
    h_ref = jax.nn.sigmoid(xb @ w1b + b1)
    ref = h_ref.astype(jnp.bfloat16).astype(f32) @ w2b + b2
    assert jnp.allclose(out, ref, atol=2e-2, rtol=2e-2)

    print("KERNEL_OK")
</pallas_src>

<mosaic_0001>
module attributes {stable_mosaic.version = 11 : i64} {
  func.func @two_layer_kernel(%arg0: i32, %arg1: memref<8x128xbf16, #tpu.memory_space<vmem>>, %arg2: memref<128x128xbf16, #tpu.memory_space<vmem>>, %arg3: memref<1x128xf32, #tpu.memory_space<vmem>>, %arg4: memref<128x128xbf16, #tpu.memory_space<vmem>>, %arg5: memref<1x128xf32, #tpu.memory_space<vmem>>, %arg6: memref<8x128xf32, #tpu.memory_space<vmem>>) attributes {dimension_semantics = [#tpu.dimension_semantics<parallel>], iteration_bounds = array<i64: 1>, scalar_prefetch = 0 : i64, scratch_operands = 0 : i64, tpu.core_type = #tpu.core_type<tc>, window_params = [{transform_indices = @transform_0, window_bounds = array<i64: 8, 128>}, {pipeline_mode = #tpu.pipeline_mode<synchronous>, transform_indices = @transform_1, window_bounds = array<i64: 128, 128>}, {pipeline_mode = #tpu.pipeline_mode<synchronous>, transform_indices = @transform_2, window_bounds = array<i64: 1, 128>}, {pipeline_mode = #tpu.pipeline_mode<synchronous>, transform_indices = @transform_3, window_bounds = array<i64: 128, 128>}, {pipeline_mode = #tpu.pipeline_mode<synchronous>, transform_indices = @transform_4, window_bounds = array<i64: 1, 128>}, {transform_indices = @transform_5, window_bounds = array<i64: 8, 128>}]} {
    %c0 = arith.constant 0 : index
    %c0_0 = arith.constant 0 : index
    %0 = vector.load %arg1[%c0, %c0_0] : memref<8x128xbf16, #tpu.memory_space<vmem>>, vector<8x128xbf16>
    %c0_1 = arith.constant 0 : index
    %c0_2 = arith.constant 0 : index
    %1 = vector.load %arg2[%c0_1, %c0_2] : memref<128x128xbf16, #tpu.memory_space<vmem>>, vector<128x128xbf16>
    %cst = arith.constant dense<0.000000e+00> : vector<8x128xf32>
    %2 = tpu.matmul %0, %1, %cst {dimension_numbers = #tpu.dot_dimension_numbers<[1], [0], [0], [1], [0, 0, 1, 1], [], []>} : vector<8x128xbf16>, vector<128x128xbf16>, vector<8x128xf32> -> vector<8x128xf32>
    %c0_3 = arith.constant 0 : index
    %c0_4 = arith.constant 0 : index
    %3 = vector.load %arg3[%c0_3, %c0_4] : memref<1x128xf32, #tpu.memory_space<vmem>>, vector<1x128xf32>
    %4 = vector.broadcast %3 : vector<1x128xf32> to vector<8x128xf32>
    %5 = arith.addf %2, %4 : vector<8x128xf32>
    %cst_5 = arith.constant 5.000000e-01 : f32
    %6 = vector.broadcast %cst_5 : f32 to vector<8x128xf32>
    %7 = arith.mulf %6, %5 : vector<8x128xf32>
    %8 = math.tanh %7 : vector<8x128xf32>
    %cst_6 = arith.constant 5.000000e-01 : f32
    %9 = vector.broadcast %cst_6 : f32 to vector<8x128xf32>
    %10 = arith.mulf %9, %8 : vector<8x128xf32>
    %cst_7 = arith.constant 5.000000e-01 : f32
    %11 = vector.broadcast %cst_7 : f32 to vector<8x128xf32>
    %12 = arith.addf %10, %11 : vector<8x128xf32>
    %13 = arith.truncf %12 : vector<8x128xf32> to vector<8x128xbf16>
    %c0_8 = arith.constant 0 : index
    %c0_9 = arith.constant 0 : index
    %14 = vector.load %arg4[%c0_8, %c0_9] : memref<128x128xbf16, #tpu.memory_space<vmem>>, vector<128x128xbf16>
    %cst_10 = arith.constant dense<0.000000e+00> : vector<8x128xf32>
    %15 = tpu.matmul %13, %14, %cst_10 {dimension_numbers = #tpu.dot_dimension_numbers<[1], [0], [0], [1], [0, 0, 1, 1], [], []>} : vector<8x128xbf16>, vector<128x128xbf16>, vector<8x128xf32> -> vector<8x128xf32>
    %c0_11 = arith.constant 0 : index
    %c0_12 = arith.constant 0 : index
    %16 = vector.load %arg5[%c0_11, %c0_12] : memref<1x128xf32, #tpu.memory_space<vmem>>, vector<1x128xf32>
    %17 = vector.broadcast %16 : vector<1x128xf32> to vector<8x128xf32>
    %18 = arith.addf %15, %17 : vector<8x128xf32>
    %c0_13 = arith.constant 0 : index
    %c0_14 = arith.constant 0 : index
    %19 = vector.load %arg6[%c0_13, %c0_14] : memref<8x128xf32, #tpu.memory_space<vmem>>, vector<8x128xf32>
    tpu.vector_store %arg6[%c0_13, %c0_14], %18 {strides = array<i32>} : memref<8x128xf32, #tpu.memory_space<vmem>>, vector<8x128xf32>,
    return
  }
  func.func @transform_0(%arg0: i32) -> (i32, i32) {
    %c0_i32 = arith.constant 0 : i32
    %c0_i32_0 = arith.constant 0 : i32
    return %arg0, %c0_i32 : i32, i32
  }
  func.func @transform_1(%arg0: i32) -> (i32, i32) {
    %c0_i32 = arith.constant 0 : i32
    %c0_i32_0 = arith.constant 0 : i32
    %c0_i32_1 = arith.constant 0 : i32
    return %c0_i32, %c0_i32_0 : i32, i32
  }
  func.func @transform_2(%arg0: i32) -> (i32, i32) {
    %c0_i32 = arith.constant 0 : i32
    %c0_i32_0 = arith.constant 0 : i32
    %c0_i32_1 = arith.constant 0 : i32
    return %c0_i32, %c0_i32_0 : i32, i32
  }
  func.func @transform_3(%arg0: i32) -> (i32, i32) {
    %c0_i32 = arith.constant 0 : i32
    %c0_i32_0 = arith.constant 0 : i32
    %c0_i32_1 = arith.constant 0 : i32
    return %c0_i32, %c0_i32_0 : i32, i32
  }
  func.func @transform_4(%arg0: i32) -> (i32, i32) {
    %c0_i32 = arith.constant 0 : i32
    %c0_i32_0 = arith.constant 0 : i32
    %c0_i32_1 = arith.constant 0 : i32
    return %c0_i32, %c0_i32_0 : i32, i32
  }
  func.func @transform_5(%arg0: i32) -> (i32, i32) {
    %c0_i32 = arith.constant 0 : i32
    %c0_i32_0 = arith.constant 0 : i32
    return %arg0, %c0_i32 : i32, i32
  }
}

module attributes {stable_mosaic.version = 11 : i64} {
  func.func @two_layer_kernel(%arg0: i32, %arg1: memref<8x128xbf16, #tpu.memory_space<vmem>>, %arg2: memref<128x128xbf16, #tpu.memory_space<vmem>>, %arg3: memref<1x128xf32, #tpu.memory_space<vmem>>, %arg4: memref<128x128xbf16, #tpu.memory_space<vmem>>, %arg5: memref<1x128xf32, #tpu.memory_space<vmem>>, %arg6: memref<8x128xf32, #tpu.memory_space<vmem>>) attributes {dimension_semantics = [#tpu.dimension_semantics<parallel>], iteration_bounds = array<i64: 1>, scalar_prefetch = 0 : i64, scratch_operands = 0 : i64, tpu.core_type = #tpu.core_type<tc>, window_params = [{transform_indices = @transform_0, window_bounds = array<i64: 8, 128>}, {pipeline_mode = #tpu.pipeline_mode<synchronous>, transform_indices = @transform_1, window_bounds = array<i64: 128, 128>}, {pipeline_mode = #tpu.pipeline_mode<synchronous>, transform_indices = @transform_2, window_bounds = array<i64: 1, 128>}, {pipeline_mode = #tpu.pipeline_mode<synchronous>, transform_indices = @transform_3, window_bounds = array<i64: 128, 128>}, {pipeline_mode = #tpu.pipeline_mode<synchronous>, transform_indices = @transform_4, window_bounds = array<i64: 1, 128>}, {transform_indices = @transform_5, window_bounds = array<i64: 8, 128>}]} {
    %c0 = arith.constant 0 : index
    %c0_0 = arith.constant 0 : index
    %0 = vector.load %arg1[%c0, %c0_0] : memref<8x128xbf16, #tpu.memory_space<vmem>>, vector<8x128xbf16>
    %c0_1 = arith.constant 0 : index
    %c0_2 = arith.constant 0 : index
    %1 = vector.load %arg2[%c0_1, %c0_2] : memref<128x128xbf16, #tpu.memory_space<vmem>>, vector<128x128xbf16>
    %cst = arith.constant dense<0.000000e+00> : vector<8x128xf32>
    %2 = tpu.matmul %0, %1, %cst {dimension_numbers = #tpu.dot_dimension_numbers<[1], [0], [0], [1], [0, 0, 1, 1], [], []>} : vector<8x128xbf16>, vector<128x128xbf16>, vector<8x128xf32> -> vector<8x128xf32>
    %c0_3 = arith.constant 0 : index
    %c0_4 = arith.constant 0 : index
    %3 = vector.load %arg3[%c0_3, %c0_4] : memref<1x128xf32, #tpu.memory_space<vmem>>, vector<1x128xf32>
    %4 = vector.broadcast %3 : vector<1x128xf32> to vector<8x128xf32>
    %5 = arith.addf %2, %4 : vector<8x128xf32>
    %cst_5 = arith.constant 5.000000e-01 : f32
    %6 = vector.broadcast %cst_5 : f32 to vector<8x128xf32>
    %7 = arith.mulf %6, %5 : vector<8x128xf32>
    %8 = math.tanh %7 : vector<8x128xf32>
    %cst_6 = arith.constant 5.000000e-01 : f32
    %9 = vector.broadcast %cst_6 : f32 to vector<8x128xf32>
    %10 = arith.mulf %9, %8 : vector<8x128xf32>
    %cst_7 = arith.constant 5.000000e-01 : f32
    %11 = vector.broadcast %cst_7 : f32 to vector<8x128xf32>
    %12 = arith.addf %10, %11 : vector<8x128xf32>
    %13 = arith.truncf %12 : vector<8x128xf32> to vector<8x128xbf16>
    %c0_8 = arith.constant 0 : index
    %c0_9 = arith.constant 0 : index
    %14 = vector.load %arg4[%c0_8, %c0_9] : memref<128x128xbf16, #tpu.memory_space<vmem>>, vector<128x128xbf16>
    %cst_10 = arith.constant dense<0.000000e+00> : vector<8x128xf32>
    %15 = tpu.matmul %13, %14, %cst_10 {dimension_numbers = #tpu.dot_dimension_numbers<[1], [0], [0], [1], [0, 0, 1, 1], [], []>} : vector<8x128xbf16>, vector<128x128xbf16>, vector<8x128xf32> -> vector<8x128xf32>
    %c0_11 = arith.constant 0 : index
    %c0_12 = arith.constant 0 : index
    %16 = vector.load %arg5[%c0_11, %c0_12] : memref<1x128xf32, #tpu.memory_space<vmem>>, vector<1x128xf32>
    %17 = vector.broadcast %16 : vector<1x128xf32> to vector<8x128xf32>
    %18 = arith.addf %15, %17 : vector<8x128xf32>
    %c0_13 = arith.constant 0 : index
    %c0_14 = arith.constant 0 : index
    %19 = vector.load %arg6[%c0_13, %c0_14] : memref<8x128xf32, #tpu.memory_space<vmem>>, vector<8x128xf32>
    tpu.vector_store %arg6[%c0_13, %c0_14], %18 {strides = array<i32>} : memref<8x128xf32, #tpu.memory_space<vmem>>, vector<8x128xf32>,
    return
  }
  func.func @transform_0(%arg0: i32) -> (i32, i32) {
    %c0_i32 = arith.constant 0 : i32
    %c0_i32_0 = arith.constant 0 : i32
    return %arg0, %c0_i32 : i32, i32
  }
  func.func @transform_1(%arg0: i32) -> (i32, i32) {
    %c0_i32 = arith.constant 0 : i32
    %c0_i32_0 = arith.constant 0 : i32
    %c0_i32_1 = arith.constant 0 : i32
    return %c0_i32, %c0_i32_0 : i32, i32
  }
  func.func @transform_2(%arg0: i32) -> (i32, i32) {
    %c0_i32 = arith.constant 0 : i32
    %c0_i32_0 = arith.constant 0 : i32
    %c0_i32_1 = arith.constant 0 : i32
    return %c0_i32, %c0_i32_0 : i32, i32
  }
  func.func @transform_3(%arg0: i32) -> (i32, i32) {
    %c0_i32 = arith.constant 0 : i32
    %c0_i32_0 = arith.constant 0 : i32
    %c0_i32_1 = arith.constant 0 : i32
    return %c0_i32, %c0_i32_0 : i32, i32
  }
  func.func @transform_4(%arg0: i32) -> (i32, i32) {
    %c0_i32 = arith.constant 0 : i32
    %c0_i32_0 = arith.constant 0 : i32
    %c0_i32_1 = arith.constant 0 : i32
    return %c0_i32, %c0_i32_0 : i32, i32
  }
  func.func @transform_5(%arg0: i32) -> (i32, i32) {
    %c0_i32 = arith.constant 0 : i32
    %c0_i32_0 = arith.constant 0 : i32
    return %arg0, %c0_i32 : i32, i32
  }
}

</mosaic_0001>

<llo_original>
// kernel: tpu_custom_call.1
$region0: #{tpu_custom_call.1}
  #allocation0 [shape = 'u32[]', space=smem, size = 0x4, offset = 0x4, fixed_abs, tag = 'smem constant byte address 0x4 - core index']
  #allocation1 [shape = 'u32[144,128]{1,0:T(1,128)}', space=vmem, size = 0x12000, scoped, tag = 'internal scratch']
  %s0 = inlined_call_operand.hbm [shape: bf16[8,128], index: 0, kind: input, shape index: {}]
  %s1 = inlined_call_operand.hbm [shape: bf16[128,128], index: 1, kind: input, shape index: {}]
  %s2 = inlined_call_operand.vmem [shape: f32[1,128], index: 2, kind: input, shape index: {}]
  %s3 = inlined_call_operand.hbm [shape: bf16[128,128], index: 3, kind: input, shape index: {}]
  %s4 = inlined_call_operand.vmem [shape: f32[1,128], index: 4, kind: input, shape index: {}]
  %s5 = inlined_call_operand.hbm [shape: f32[8,128], index: 5, kind: output, shape index: {}]
  %s6 = sld [smem:[#allocation0]]
  $region42: #{tpu_custom_call.1} parent=0
    _
  %s8 = ssub.s32 1, %s6
  %s9 = scalar_select 0, %s8, %s6
  $region1: #{tpu_custom_call.1} parent=0
    #allocation2 [shape = 'u8[2048]{0}', space=vmem, size = 0x800, scoped, tag = 'input window, operand 0, single buffered']
    #allocation3 [shape = 's32[1]{0}', space=sflag, size = 0x4, scoped, tag = 'scoped memory for tpu_custom_call.1']
    #allocation4 [shape = 's32[1]{0}', space=sflag, size = 0x4, scoped, tag = 'scoped memory for tpu_custom_call.1']
    #allocation5 [shape = 'u8[32768]{0}', space=vmem, size = 0x8000, scoped, tag = 'input window, operand 1, single buffered']
    #allocation6 [shape = 's32[1]{0}', space=sflag, size = 0x4, scoped, tag = 'scoped memory for tpu_custom_call.1']
    #allocation7 [shape = 'u8[32768]{0}', space=vmem, size = 0x8000, scoped, tag = 'input window, operand 3, single buffered']
    #allocation8 [shape = 'u8[4096]{0}', space=vmem, size = 0x1000, scoped, tag = 'output window, operand 0, single buffered']
    %10 = vsyncpa [#allocation3], 0
    %11 = vsyncpa [#allocation6], 0
    %12 = vsyncpa [#allocation4], 0
    // Predicated region
    $region2: #{tpu_custom_call.1} parent=1 // pred_check
      _
    $region3: #{tpu_custom_call.1} parent=1 // pred_check_branch
      %14 = sbr.rel (0) target = $region5
    $region4: #{tpu_custom_call.1} parent=1 // pred_region
      %s16 = ssub.s32 64, 64
      %17 = vsyncadd [#allocation3], %s16
      %s19 = sshll.u32 [#allocation2], 4
      %s20 = int_to_ptr.vmem [resolvable:$true] %s19
      %22 = dma.hbm_to_vmem [thread:$0]  %s0, 64, %s20, [#allocation3]
    $region5: #{tpu_custom_call.1} parent=1 // pred_fallthru
      _
    // Predicated region
    $region6: #{tpu_custom_call.1} parent=1 // pred_check
      _
    $region7: #{tpu_custom_call.1} parent=1 // pred_check_branch
      %24 = sbr.rel (0) target = $region9
    $region8: #{tpu_custom_call.1} parent=1 // pred_region
      %s26 = ssub.s32 1024, 1024
      %27 = vsyncadd [#allocation6], %s26
      %s28 = sshll.u32 [#allocation5], 4
      %s29 = int_to_ptr.vmem [resolvable:$true] %s28
      %34 = dma.hbm_to_vmem [thread:$0]  %s1, 1024, %s29, [#allocation6], 64, 64, 4
    $region9: #{tpu_custom_call.1} parent=1 // pred_fallthru
      _
    // Predicated region
    $region10: #{tpu_custom_call.1} parent=1 // pred_check
      _
    $region11: #{tpu_custom_call.1} parent=1 // pred_check_branch
      %36 = sbr.rel (0) target = $region13
    $region12: #{tpu_custom_call.1} parent=1 // pred_region
      _
    $region13: #{tpu_custom_call.1} parent=1 // pred_fallthru
      _
    // Predicated region
    $region14: #{tpu_custom_call.1} parent=1 // pred_check
      _
    $region15: #{tpu_custom_call.1} parent=1 // pred_check_branch
      %38 = sbr.rel (0) target = $region17
    $region16: #{tpu_custom_call.1} parent=1 // pred_region
      %s40 = ssub.s32 1024, 1024
      %41 = vsyncadd [#allocation6], %s40
      %s42 = sshll.u32 [#allocation7], 4
      %s43 = int_to_ptr.vmem [resolvable:$true] %s42
      %48 = dma.hbm_to_vmem [thread:$0]  %s3, 1024, %s43, [#allocation6], 64, 64, 4
    $region17: #{tpu_custom_call.1} parent=1 // pred_fallthru
      _
    // Predicated region
    $region18: #{tpu_custom_call.1} parent=1 // pred_check
      _
    $region19: #{tpu_custom_call.1} parent=1 // pred_check_branch
      %50 = sbr.rel (0) target = $region21
    $region20: #{tpu_custom_call.1} parent=1 // pred_region
      _
    $region21: #{tpu_custom_call.1} parent=1 // pred_fallthru
      _
    // Predicated region
    $region22: #{tpu_custom_call.1} parent=1 // pred_check
      _
    $region23: #{tpu_custom_call.1} parent=1 // pred_check_branch
      %52 = sbr.rel (0) target = $region25
    $region24: #{tpu_custom_call.1} parent=1 // pred_region
      %53 = dma.done [#allocation3], 64
    $region25: #{tpu_custom_call.1} parent=1 // pred_fallthru
      _
    // Predicated region
    $region26: #{tpu_custom_call.1} parent=1 // pred_check
      _
    $region27: #{tpu_custom_call.1} parent=1 // pred_check_branch
      %55 = sbr.rel (0) target = $region29
    $region28: #{tpu_custom_call.1} parent=1 // pred_region
      %56 = dma.done [#allocation6], 1024
    $region29: #{tpu_custom_call.1} parent=1 // pred_fallthru
      _
    // Predicated region
    $region30: #{tpu_custom_call.1} parent=1 // pred_check
      _
    $region31: #{tpu_custom_call.1} parent=1 // pred_check_branch
      %58 = sbr.rel (0) target = $region33
    $region32: #{tpu_custom_call.1} parent=1 // pred_region
      %59 = dma.done [#allocation6], 1024
    $region33: #{tpu_custom_call.1} parent=1 // pred_fallthru
      _
    %v61 = vld [vmem:[#allocation2] sm:$0xf]
    %v62 = vld [vmem:[#allocation5] sm:$0xf]
    %v63 = vld [vmem:[#allocation5 + $0x4] sm:$0xf]
    %v64 = vld [vmem:[#allocation5 + $0x8] sm:$0xf]
    %v65 = vld [vmem:[#allocation5 + $0xc] sm:$0xf]
    %v66 = vld [vmem:[#allocation5 + $0x10] sm:$0xf]
    %v67 = vld [vmem:[#allocation5 + $0x14] sm:$0xf]
    %v68 = vld [vmem:[#allocation5 + $0x18] sm:$0xf]
    %v69 = vld [vmem:[#allocation5 + $0x1c] sm:$0xf]
    %v70 = vld [vmem:[#allocation5 + $0x20] sm:$0xf]
    %v71 = vld [vmem:[#allocation5 + $0x24] sm:$0xf]
    %v72 = vld [vmem:[#allocation5 + $0x28] sm:$0xf]
    %v73 = vld [vmem:[#allocation5 + $0x2c] sm:$0xf]
    %v74 = vld [vmem:[#allocation5 + $0x30] sm:$0xf]
    %v75 = vld [vmem:[#allocation5 + $0x34] sm:$0xf]
    %v76 = vld [vmem:[#allocation5 + $0x38] sm:$0xf]
    %v77 = vld [vmem:[#allocation5 + $0x3c] sm:$0xf]
    %v78 = vld [vmem:[%s2] sm:$0x1]
    %v80 = vlaneseq
    %v81 = vshrl.u32 %v80, 7
    %v82 = vsub.s32 0, %v81
    %v83 = vrot.slane %v78, %v82
    %v101 = vunpack.c.l.b16 %v62
    %v102 = vunpack.c.l.b16 %v63
    %v103 = vunpack.c.l.b16 %v64
    %v104 = vunpack.c.l.b16 %v65
    %v105 = vunpack.c.l.b16 %v66
    %v106 = vunpack.c.l.b16 %v67
    %v107 = vunpack.c.l.b16 %v68
    %v108 = vunpack.c.l.b16 %v69
    %v109 = vunpack.c.l.b16 %v70
    %v110 = vunpack.c.l.b16 %v71
    %v111 = vunpack.c.l.b16 %v72
    %v112 = vunpack.c.l.b16 %v73
    %v113 = vunpack.c.l.b16 %v74
    %v114 = vunpack.c.l.b16 %v75
    %v115 = vunpack.c.l.b16 %v76
    %v116 = vunpack.c.l.b16 %v77
    %v117 = vpack.c.b16 %v102, %v101
    %v118 = vpack.c.b16 %v104, %v103
    %v119 = vpack.c.b16 %v106, %v105
    %v120 = vpack.c.b16 %v108, %v107
    %v121 = vpack.c.b16 %v110, %v109
    %v122 = vpack.c.b16 %v112, %v111
    %v123 = vpack.c.b16 %v114, %v113
    %v124 = vpack.c.b16 %v116, %v115
    %133 = vmatprep.subr.bf16.mxu0 0
    %134 = vmatpush1.bf16.msra.mxu0 %v124
    %135 = vmatprep.subr.bf16.mxu0 0
    %136 = vmatpush1.bf16.msra.mxu0 %v123
    %137 = vmatprep.subr.bf16.mxu0 0
    %138 = vmatpush1.bf16.msra.mxu0 %v122
    %139 = vmatprep.subr.bf16.mxu0 0
    %140 = vmatpush1.bf16.msra.mxu0 %v121
    %141 = vmatprep.subr.bf16.mxu0 0
    %142 = vmatpush1.bf16.msra.mxu0 %v120
    %143 = vmatprep.subr.bf16.mxu0 0
    %144 = vmatpush1.bf16.msra.mxu0 %v119
    %145 = vmatprep.subr.bf16.mxu0 0
    %146 = vmatpush1.bf16.msra.mxu0 %v118
    %147 = vmatprep.subr.bf16.mxu0 0
    %148 = vmatpush1.bf16.msra.mxu0 %v117
    %149 = vmatprep.subr.bf16.mxu0 0
    %150 = vmatpush2.bf16.msra.mxu0 0
    %151 = vmatprep.subr.bf16.mxu0 0
    %152 = vmatpush2.bf16.msra.mxu0 0
    %153 = vmatprep.subr.bf16.mxu0 0
    %154 = vmatpush2.bf16.msra.mxu0 0
    %155 = vmatprep.subr.bf16.mxu0 0
    %156 = vmatpush2.bf16.msra.mxu0 0
    %157 = vmatprep.subr.bf16.mxu0 0
    %158 = vmatpush2.bf16.msra.mxu0 0
    %159 = vmatprep.subr.bf16.mxu0 0
    %160 = vmatpush2.bf16.msra.mxu0 0
    %161 = vmatprep.subr.bf16.mxu0 0
    %162 = vmatpush2.bf16.msra.mxu0 0
    %163 = vmatprep.subr.bf16.mxu0 0
    %164 = vmatpush2.bf16.msra.mxu0 0
    %165 = vmatprep.mubr.bf16.mxu0 0
    %166 = vmatmul.mubr.bf16.gmra.mxu0 %v61
    %v167 = vpop.f32.mrf.mxu0
    %v168 = vadd.f32 %v83, %v167
    %v169 = vpop.f32.mrf.mxu0
    %v170 = vpop.f32.mrf.mxu0
    %v171 = vpop.f32.mrf.mxu0
    %172 = vdwg.mxu0
    %v173 = vmul.f32 %v168, 0.5
    %v174 = vtanh.pop %v173
    %v175 = vmul.f32 %v174, 0.5
    %v176 = vadd.f32 %v175, 0.5
    %v177 = vpack.c.bf16 %v176, %v176
    %v178 = vld [vmem:[#allocation7] sm:$0xf]
    %v179 = vld [vmem:[#allocation7 + $0x4] sm:$0xf]
    %v180 = vld [vmem:[#allocation7 + $0x8] sm:$0xf]
    %v181 = vld [vmem:[#allocation7 + $0xc] sm:$0xf]
    %v182 = vld [vmem:[#allocation7 + $0x10] sm:$0xf]
    %v183 = vld [vmem:[#allocation7 + $0x14] sm:$0xf]
    %v184 = vld [vmem:[#allocation7 + $0x18] sm:$0xf]
    %v185 = vld [vmem:[#allocation7 + $0x1c] sm:$0xf]
    %v186 = vld [vmem:[#allocation7 + $0x20] sm:$0xf]
    %v187 = vld [vmem:[#allocation7 + $0x24] sm:$0xf]
    %v188 = vld [vmem:[#allocation7 + $0x28] sm:$0xf]
    %v189 = vld [vmem:[#allocation7 + $0x2c] sm:$0xf]
    %v190 = vld [vmem:[#allocation7 + $0x30] sm:$0xf]
    %v191 = vld [vmem:[#allocation7 + $0x34] sm:$0xf]
    %v192 = vld [vmem:[#allocation7 + $0x38] sm:$0xf]
    %v193 = vld [vmem:[#allocation7 + $0x3c] sm:$0xf]
    %v194 = vld [vmem:[%s4] sm:$0x1]
    %v196 = vlaneseq
    %v197 = vshrl.u32 %v196, 7
    %v198 = vsub.s32 0, %v197
    %v199 = vrot.slane %v194, %v198
    %v217 = vunpack.c.l.b16 %v178
    %v218 = vunpack.c.l.b16 %v179
    %v219 = vunpack.c.l.b16 %v180
    %v220 = vunpack.c.l.b16 %v181
    %v221 = vunpack.c.l.b16 %v182
    %v222 = vunpack.c.l.b16 %v183
    %v223 = vunpack.c.l.b16 %v184
    %v224 = vunpack.c.l.b16 %v185
    %v225 = vunpack.c.l.b16 %v186
    %v226 = vunpack.c.l.b16 %v187
    %v227 = vunpack.c.l.b16 %v188
    %v228 = vunpack.c.l.b16 %v189
    %v229 = vunpack.c.l.b16 %v190
    %v230 = vunpack.c.l.b16 %v191
    %v231 = vunpack.c.l.b16 %v192
    %v232 = vunpack.c.l.b16 %v193
    %v233 = vpack.c.b16 %v218, %v217
    %v234 = vpack.c.b16 %v220, %v219
    %v235 = vpack.c.b16 %v222, %v221
    %v236 = vpack.c.b16 %v224, %v223
    %v237 = vpack.c.b16 %v226, %v225
    %v238 = vpack.c.b16 %v228, %v227
    %v239 = vpack.c.b16 %v230, %v229
    %v240 = vpack.c.b16 %v232, %v231
    %249 = vmatprep.subr.bf16.mxu0 0
    %250 = vmatpush1.bf16.msra.mxu0 %v240
    %251 = vmatprep.subr.bf16.mxu0 0
    %252 = vmatpush1.bf16.msra.mxu0 %v239
    %253 = vmatprep.subr.bf16.mxu0 0
    %254 = vmatpush1.bf16.msra.mxu0 %v238
    %255 = vmatprep.subr.bf16.mxu0 0
    %256 = vmatpush1.bf16.msra.mxu0 %v237
    %257 = vmatprep.subr.bf16.mxu0 0
    %258 = vmatpush1.bf16.msra.mxu0 %v236
    %259 = vmatprep.subr.bf16.mxu0 0
    %260 = vmatpush1.bf16.msra.mxu0 %v235
    %261 = vmatprep.subr.bf16.mxu0 0
    %262 = vmatpush1.bf16.msra.mxu0 %v234
    %263 = vmatprep.subr.bf16.mxu0 0
    %264 = vmatpush1.bf16.msra.mxu0 %v233
    %265 = vmatprep.subr.bf16.mxu0 0
    %266 = vmatpush2.bf16.msra.mxu0 0
    %267 = vmatprep.subr.bf16.mxu0 0
    %268 = vmatpush2.bf16.msra.mxu0 0
    %269 = vmatprep.subr.bf16.mxu0 0
    %270 = vmatpush2.bf16.msra.mxu0 0
    %271 = vmatprep.subr.bf16.mxu0 0
    %272 = vmatpush2.bf16.msra.mxu0 0
    %273 = vmatprep.subr.bf16.mxu0 0
    %274 = vmatpush2.bf16.msra.mxu0 0
    %275 = vmatprep.subr.bf16.mxu0 0
    %276 = vmatpush2.bf16.msra.mxu0 0
    %277 = vmatprep.subr.bf16.mxu0 0
    %278 = vmatpush2.bf16.msra.mxu0 0
    %279 = vmatprep.subr.bf16.mxu0 0
    %280 = vmatpush2.bf16.msra.mxu0 0
    %281 = vmatprep.mubr.bf16.mxu0 0
    %282 = vmatmul.mubr.bf16.gmra.mxu0 %v177
    %v283 = vpop.f32.mrf.mxu0
    %v284 = vadd.f32 %v199, %v283
    %v285 = vpop.f32.mrf.mxu0
    %v286 = vpop.f32.mrf.mxu0
    %v287 = vpop.f32.mrf.mxu0
    %288 = vdwg.mxu0
    %289 = vst [vmem:[#allocation8] sm:$0xff] %v284
    // Predicated region
    $region34: #{tpu_custom_call.1} parent=1 // pred_check
      _
    $region35: #{tpu_custom_call.1} parent=1 // pred_check_branch
      %291 = sbr.rel (0) target = $region37
    $region36: #{tpu_custom_call.1} parent=1 // pred_region
      %s293 = ssub.s32 128, 128
      %294 = vsyncadd [#allocation4], %s293
      %s296 = sshll.u32 [#allocation8], 4
      %s297 = int_to_ptr.vmem [resolvable:$true] %s296
      %299 = dma.vmem_to_hbm [thread:$0]  %s297, 128, %s5, [#allocation4]
    $region37: #{tpu_custom_call.1} parent=1 // pred_fallthru
      _
    // Predicated region
    $region38: #{tpu_custom_call.1} parent=1 // pred_check
      _
    $region39: #{tpu_custom_call.1} parent=1 // pred_check_branch
      %301 = sbr.rel (0) target = $region41
    $region40: #{tpu_custom_call.1} parent=1 // pred_region
      %302 = dma.done [#allocation4], 128
    $region41: #{tpu_custom_call.1} parent=1 // pred_fallthru
      _
    %303 = vsyncpa [#allocation3], 1
    %304 = vsyncpa [#allocation6], 1
    %305 = vsyncpa [#allocation4], 1

// kernel: tpu_custom_call.1
$region0: #{tpu_custom_call.1}
  #allocation0 [shape = 'u32[]', space=smem, size = 0x4, offset = 0x4, fixed_abs, tag = 'smem constant byte address 0x4 - core index']
  #allocation1 [shape = 'u32[144,128]{1,0:T(1,128)}', space=vmem, size = 0x12000, scoped, tag = 'internal scratch']
  %s0 = inlined_call_operand.hbm [shape: bf16[8,128], index: 0, kind: input, shape index: {}]
  %s1 = inlined_call_operand.hbm [shape: bf16[128,128], index: 1, kind: input, shape index: {}]
  %s2 = inlined_call_operand.vmem [shape: f32[1,128], index: 2, kind: input, shape index: {}]
  %s3 = inlined_call_operand.hbm [shape: bf16[128,128], index: 3, kind: input, shape index: {}]
  %s4 = inlined_call_operand.vmem [shape: f32[1,128], index: 4, kind: input, shape index: {}]
  %s5 = inlined_call_operand.hbm [shape: f32[8,128], index: 5, kind: output, shape index: {}]
  %s6 = sld [smem:[#allocation0]]
  $region42: #{tpu_custom_call.1} parent=0
    _
  %s8 = ssub.s32 1, %s6
  %s9 = scalar_select 0, %s8, %s6
  $region1: #{tpu_custom_call.1} parent=0
    #allocation2 [shape = 'u8[2048]{0}', space=vmem, size = 0x800, scoped, tag = 'input window, operand 0, single buffered']
    #allocation3 [shape = 's32[1]{0}', space=sflag, size = 0x4, scoped, tag = 'scoped memory for tpu_custom_call.1']
    #allocation4 [shape = 's32[1]{0}', space=sflag, size = 0x4, scoped, tag = 'scoped memory for tpu_custom_call.1']
    #allocation5 [shape = 'u8[32768]{0}', space=vmem, size = 0x8000, scoped, tag = 'input window, operand 1, single buffered']
    #allocation6 [shape = 's32[1]{0}', space=sflag, size = 0x4, scoped, tag = 'scoped memory for tpu_custom_call.1']
    #allocation7 [shape = 'u8[32768]{0}', space=vmem, size = 0x8000, scoped, tag = 'input window, operand 3, single buffered']
    #allocation8 [shape = 'u8[4096]{0}', space=vmem, size = 0x1000, scoped, tag = 'output window, operand 0, single buffered']
    %10 = vsyncpa [#allocation3], 0
    %11 = vsyncpa [#allocation6], 0
    %12 = vsyncpa [#allocation4], 0
    // Predicated region
    $region2: #{tpu_custom_call.1} parent=1 // pred_check
      _
    $region3: #{tpu_custom_call.1} parent=1 // pred_check_branch
      %14 = sbr.rel (0) target = $region5
    $region4: #{tpu_custom_call.1} parent=1 // pred_region
      %s16 = ssub.s32 64, 64
      %17 = vsyncadd [#allocation3], %s16
      %s19 = sshll.u32 [#allocation2], 4
      %s20 = int_to_ptr.vmem [resolvable:$true] %s19
      %22 = dma.hbm_to_vmem [thread:$0]  %s0, 64, %s20, [#allocation3]
    $region5: #{tpu_custom_call.1} parent=1 // pred_fallthru
      _
    // Predicated region
    $region6: #{tpu_custom_call.1} parent=1 // pred_check
      _
    $region7: #{tpu_custom_call.1} parent=1 // pred_check_branch
      %24 = sbr.rel (0) target = $region9
    $region8: #{tpu_custom_call.1} parent=1 // pred_region
      %s26 = ssub.s32 1024, 1024
      %27 = vsyncadd [#allocation6], %s26
      %s28 = sshll.u32 [#allocation5], 4
      %s29 = int_to_ptr.vmem [resolvable:$true] %s28
      %34 = dma.hbm_to_vmem [thread:$0]  %s1, 1024, %s29, [#allocation6], 64, 64, 4
    $region9: #{tpu_custom_call.1} parent=1 // pred_fallthru
      _
    // Predicated region
    $region10: #{tpu_custom_call.1} parent=1 // pred_check
      _
    $region11: #{tpu_custom_call.1} parent=1 // pred_check_branch
      %36 = sbr.rel (0) target = $region13
    $region12: #{tpu_custom_call.1} parent=1 // pred_region
      _
    $region13: #{tpu_custom_call.1} parent=1 // pred_fallthru
      _
    // Predicated region
    $region14: #{tpu_custom_call.1} parent=1 // pred_check
      _
    $region15: #{tpu_custom_call.1} parent=1 // pred_check_branch
      %38 = sbr.rel (0) target = $region17
    $region16: #{tpu_custom_call.1} parent=1 // pred_region
      %s40 = ssub.s32 1024, 1024
      %41 = vsyncadd [#allocation6], %s40
      %s42 = sshll.u32 [#allocation7], 4
      %s43 = int_to_ptr.vmem [resolvable:$true] %s42
      %48 = dma.hbm_to_vmem [thread:$0]  %s3, 1024, %s43, [#allocation6], 64, 64, 4
    $region17: #{tpu_custom_call.1} parent=1 // pred_fallthru
      _
    // Predicated region
    $region18: #{tpu_custom_call.1} parent=1 // pred_check
      _
    $region19: #{tpu_custom_call.1} parent=1 // pred_check_branch
      %50 = sbr.rel (0) target = $region21
    $region20: #{tpu_custom_call.1} parent=1 // pred_region
      _
    $region21: #{tpu_custom_call.1} parent=1 // pred_fallthru
      _
    // Predicated region
    $region22: #{tpu_custom_call.1} parent=1 // pred_check
      _
    $region23: #{tpu_custom_call.1} parent=1 // pred_check_branch
      %52 = sbr.rel (0) target = $region25
    $region24: #{tpu_custom_call.1} parent=1 // pred_region
      %53 = dma.done [#allocation3], 64
    $region25: #{tpu_custom_call.1} parent=1 // pred_fallthru
      _
    // Predicated region
    $region26: #{tpu_custom_call.1} parent=1 // pred_check
      _
    $region27: #{tpu_custom_call.1} parent=1 // pred_check_branch
      %55 = sbr.rel (0) target = $region29
    $region28: #{tpu_custom_call.1} parent=1 // pred_region
      %56 = dma.done [#allocation6], 1024
    $region29: #{tpu_custom_call.1} parent=1 // pred_fallthru
      _
    // Predicated region
    $region30: #{tpu_custom_call.1} parent=1 // pred_check
      _
    $region31: #{tpu_custom_call.1} parent=1 // pred_check_branch
      %58 = sbr.rel (0) target = $region33
    $region32: #{tpu_custom_call.1} parent=1 // pred_region
      %59 = dma.done [#allocation6], 1024
    $region33: #{tpu_custom_call.1} parent=1 // pred_fallthru
      _
    %v61 = vld [vmem:[#allocation2] sm:$0xf]
    %v62 = vld [vmem:[#allocation5] sm:$0xf]
    %v63 = vld [vmem:[#allocation5 + $0x4] sm:$0xf]
    %v64 = vld [vmem:[#allocation5 + $0x8] sm:$0xf]
    %v65 = vld [vmem:[#allocation5 + $0xc] sm:$0xf]
    %v66 = vld [vmem:[#allocation5 + $0x10] sm:$0xf]
    %v67 = vld [vmem:[#allocation5 + $0x14] sm:$0xf]
    %v68 = vld [vmem:[#allocation5 + $0x18] sm:$0xf]
    %v69 = vld [vmem:[#allocation5 + $0x1c] sm:$0xf]
    %v70 = vld [vmem:[#allocation5 + $0x20] sm:$0xf]
    %v71 = vld [vmem:[#allocation5 + $0x24] sm:$0xf]
    %v72 = vld [vmem:[#allocation5 + $0x28] sm:$0xf]
    %v73 = vld [vmem:[#allocation5 + $0x2c] sm:$0xf]
    %v74 = vld [vmem:[#allocation5 + $0x30] sm:$0xf]
    %v75 = vld [vmem:[#allocation5 + $0x34] sm:$0xf]
    %v76 = vld [vmem:[#allocation5 + $0x38] sm:$0xf]
    %v77 = vld [vmem:[#allocation5 + $0x3c] sm:$0xf]
    %v78 = vld [vmem:[%s2] sm:$0x1]
    %v80 = vlaneseq
    %v81 = vshrl.u32 %v80, 7
    %v82 = vsub.s32 0, %v81
    %v83 = vrot.slane %v78, %v82
    %v101 = vunpack.c.l.b16 %v62
    %v102 = vunpack.c.l.b16 %v63
    %v103 = vunpack.c.l.b16 %v64
    %v104 = vunpack.c.l.b16 %v65
    %v105 = vunpack.c.l.b16 %v66
    %v106 = vunpack.c.l.b16 %v67
    %v107 = vunpack.c.l.b16 %v68
    %v108 = vunpack.c.l.b16 %v69
    %v109 = vunpack.c.l.b16 %v70
    %v110 = vunpack.c.l.b16 %v71
    %v111 = vunpack.c.l.b16 %v72
    %v112 = vunpack.c.l.b16 %v73
    %v113 = vunpack.c.l.b16 %v74
    %v114 = vunpack.c.l.b16 %v75
    %v115 = vunpack.c.l.b16 %v76
    %v116 = vunpack.c.l.b16 %v77
    %v117 = vpack.c.b16 %v102, %v101
    %v118 = vpack.c.b16 %v104, %v103
    %v119 = vpack.c.b16 %v106, %v105
    %v120 = vpack.c.b16 %v108, %v107
    %v121 = vpack.c.b16 %v110, %v109
    %v122 = vpack.c.b16 %v112, %v111
    %v123 = vpack.c.b16 %v114, %v113
    %v124 = vpack.c.b16 %v116, %v115
    %133 = vmatprep.subr.bf16.mxu0 0
    %134 = vmatpush1.bf16.msra.mxu0 %v124
    %135 = vmatprep.subr.bf16.mxu0 0
    %136 = vmatpush1.bf16.msra.mxu0 %v123
    %137 = vmatprep.subr.bf16.mxu0 0
    %138 = vmatpush1.bf16.msra.mxu0 %v122
    %139 = vmatprep.subr.bf16.mxu0 0
    %140 = vmatpush1.bf16.msra.mxu0 %v121
    %141 = vmatprep.subr.bf16.mxu0 0
    %142 = vmatpush1.bf16.msra.mxu0 %v120
    %143 = vmatprep.subr.bf16.mxu0 0
    %144 = vmatpush1.bf16.msra.mxu0 %v119
    %145 = vmatprep.subr.bf16.mxu0 0
    %146 = vmatpush1.bf16.msra.mxu0 %v118
    %147 = vmatprep.subr.bf16.mxu0 0
    %148 = vmatpush1.bf16.msra.mxu0 %v117
    %149 = vmatprep.subr.bf16.mxu0 0
    %150 = vmatpush2.bf16.msra.mxu0 0
    %151 = vmatprep.subr.bf16.mxu0 0
    %152 = vmatpush2.bf16.msra.mxu0 0
    %153 = vmatprep.subr.bf16.mxu0 0
    %154 = vmatpush2.bf16.msra.mxu0 0
    %155 = vmatprep.subr.bf16.mxu0 0
    %156 = vmatpush2.bf16.msra.mxu0 0
    %157 = vmatprep.subr.bf16.mxu0 0
    %158 = vmatpush2.bf16.msra.mxu0 0
    %159 = vmatprep.subr.bf16.mxu0 0
    %160 = vmatpush2.bf16.msra.mxu0 0
    %161 = vmatprep.subr.bf16.mxu0 0
    %162 = vmatpush2.bf16.msra.mxu0 0
    %163 = vmatprep.subr.bf16.mxu0 0
    %164 = vmatpush2.bf16.msra.mxu0 0
    %165 = vmatprep.mubr.bf16.mxu0 0
    %166 = vmatmul.mubr.bf16.gmra.mxu0 %v61
    %v167 = vpop.f32.mrf.mxu0
    %v168 = vadd.f32 %v83, %v167
    %v169 = vpop.f32.mrf.mxu0
    %v170 = vpop.f32.mrf.mxu0
    %v171 = vpop.f32.mrf.mxu0
    %172 = vdwg.mxu0
    %v173 = vmul.f32 %v168, 0.5
    %v174 = vtanh.pop %v173
    %v175 = vmul.f32 %v174, 0.5
    %v176 = vadd.f32 %v175, 0.5
    %v177 = vpack.c.bf16 %v176, %v176
    %v178 = vld [vmem:[#allocation7] sm:$0xf]
    %v179 = vld [vmem:[#allocation7 + $0x4] sm:$0xf]
    %v180 = vld [vmem:[#allocation7 + $0x8] sm:$0xf]
    %v181 = vld [vmem:[#allocation7 + $0xc] sm:$0xf]
    %v182 = vld [vmem:[#allocation7 + $0x10] sm:$0xf]
    %v183 = vld [vmem:[#allocation7 + $0x14] sm:$0xf]
    %v184 = vld [vmem:[#allocation7 + $0x18] sm:$0xf]
    %v185 = vld [vmem:[#allocation7 + $0x1c] sm:$0xf]
    %v186 = vld [vmem:[#allocation7 + $0x20] sm:$0xf]
    %v187 = vld [vmem:[#allocation7 + $0x24] sm:$0xf]
    %v188 = vld [vmem:[#allocation7 + $0x28] sm:$0xf]
    %v189 = vld [vmem:[#allocation7 + $0x2c] sm:$0xf]
    %v190 = vld [vmem:[#allocation7 + $0x30] sm:$0xf]
    %v191 = vld [vmem:[#allocation7 + $0x34] sm:$0xf]
    %v192 = vld [vmem:[#allocation7 + $0x38] sm:$0xf]
    %v193 = vld [vmem:[#allocation7 + $0x3c] sm:$0xf]
    %v194 = vld [vmem:[%s4] sm:$0x1]
    %v196 = vlaneseq
    %v197 = vshrl.u32 %v196, 7
    %v198 = vsub.s32 0, %v197
    %v199 = vrot.slane %v194, %v198
    %v217 = vunpack.c.l.b16 %v178
    %v218 = vunpack.c.l.b16 %v179
    %v219 = vunpack.c.l.b16 %v180
    %v220 = vunpack.c.l.b16 %v181
    %v221 = vunpack.c.l.b16 %v182
    %v222 = vunpack.c.l.b16 %v183
    %v223 = vunpack.c.l.b16 %v184
    %v224 = vunpack.c.l.b16 %v185
    %v225 = vunpack.c.l.b16 %v186
    %v226 = vunpack.c.l.b16 %v187
    %v227 = vunpack.c.l.b16 %v188
    %v228 = vunpack.c.l.b16 %v189
    %v229 = vunpack.c.l.b16 %v190
    %v230 = vunpack.c.l.b16 %v191
    %v231 = vunpack.c.l.b16 %v192
    %v232 = vunpack.c.l.b16 %v193
    %v233 = vpack.c.b16 %v218, %v217
    %v234 = vpack.c.b16 %v220, %v219
    %v235 = vpack.c.b16 %v222, %v221
    %v236 = vpack.c.b16 %v224, %v223
    %v237 = vpack.c.b16 %v226, %v225
    %v238 = vpack.c.b16 %v228, %v227
    %v239 = vpack.c.b16 %v230, %v229
    %v240 = vpack.c.b16 %v232, %v231
    %249 = vmatprep.subr.bf16.mxu0 0
    %250 = vmatpush1.bf16.msra.mxu0 %v240
    %251 = vmatprep.subr.bf16.mxu0 0
    %252 = vmatpush1.bf16.msra.mxu0 %v239
    %253 = vmatprep.subr.bf16.mxu0 0
    %254 = vmatpush1.bf16.msra.mxu0 %v238
    %255 = vmatprep.subr.bf16.mxu0 0
    %256 = vmatpush1.bf16.msra.mxu0 %v237
    %257 = vmatprep.subr.bf16.mxu0 0
    %258 = vmatpush1.bf16.msra.mxu0 %v236
    %259 = vmatprep.subr.bf16.mxu0 0
    %260 = vmatpush1.bf16.msra.mxu0 %v235
    %261 = vmatprep.subr.bf16.mxu0 0
    %262 = vmatpush1.bf16.msra.mxu0 %v234
    %263 = vmatprep.subr.bf16.mxu0 0
    %264 = vmatpush1.bf16.msra.mxu0 %v233
    %265 = vmatprep.subr.bf16.mxu0 0
    %266 = vmatpush2.bf16.msra.mxu0 0
    %267 = vmatprep.subr.bf16.mxu0 0
    %268 = vmatpush2.bf16.msra.mxu0 0
    %269 = vmatprep.subr.bf16.mxu0 0
    %270 = vmatpush2.bf16.msra.mxu0 0
    %271 = vmatprep.subr.bf16.mxu0 0
    %272 = vmatpush2.bf16.msra.mxu0 0
    %273 = vmatprep.subr.bf16.mxu0 0
    %274 = vmatpush2.bf16.msra.mxu0 0
    %275 = vmatprep.subr.bf16.mxu0 0
    %276 = vmatpush2.bf16.msra.mxu0 0
    %277 = vmatprep.subr.bf16.mxu0 0
    %278 = vmatpush2.bf16.msra.mxu0 0
    %279 = vmatprep.subr.bf16.mxu0 0
    %280 = vmatpush2.bf16.msra.mxu0 0
    %281 = vmatprep.mubr.bf16.mxu0 0
    %282 = vmatmul.mubr.bf16.gmra.mxu0 %v177
    %v283 = vpop.f32.mrf.mxu0
    %v284 = vadd.f32 %v199, %v283
    %v285 = vpop.f32.mrf.mxu0
    %v286 = vpop.f32.mrf.mxu0
    %v287 = vpop.f32.mrf.mxu0
    %288 = vdwg.mxu0
    %289 = vst [vmem:[#allocation8] sm:$0xff] %v284
    // Predicated region
    $region34: #{tpu_custom_call.1} parent=1 // pred_check
      _
    $region35: #{tpu_custom_call.1} parent=1 // pred_check_branch
      %291 = sbr.rel (0) target = $region37
    $region36: #{tpu_custom_call.1} parent=1 // pred_region
      %s293 = ssub.s32 128, 128
      %294 = vsyncadd [#allocation4], %s293
      %s296 = sshll.u32 [#allocation8], 4
      %s297 = int_to_ptr.vmem [resolvable:$true] %s296
      %299 = dma.vmem_to_hbm [thread:$0]  %s297, 128, %s5, [#allocation4]
    $region37: #{tpu_custom_call.1} parent=1 // pred_fallthru
      _
    // Predicated region
    $region38: #{tpu_custom_call.1} parent=1 // pred_check
      _
    $region39: #{tpu_custom_call.1} parent=1 // pred_check_branch
      %301 = sbr.rel (0) target = $region41
    $region40: #{tpu_custom_call.1} parent=1 // pred_region
      %302 = dma.done [#allocation4], 128
    $region41: #{tpu_custom_call.1} parent=1 // pred_fallthru
      _
    %303 = vsyncpa [#allocation3], 1
    %304 = vsyncpa [#allocation6], 1
    %305 = vsyncpa [#allocation4], 1

</llo_original>
